<compile_context>
chip_gen: v7x
topology: tpu7x:2x2x1
jax: 0.10.0
libtpu: 0.0.40
codegen_flags: <defaults>
</compile_context>

<pallas_src>
import functools
import math

import jax
import jax.numpy as jnp
from jax.experimental import pallas as pl
from jax.experimental.pallas import tpu as pltpu


def _cdiv(a, b):
    return (a + b - 1) // b


def _round_up(a, b):
    return _cdiv(a, b) * b


def _lane_fold(v):
    """(TB, TC) -> (TB, 128): sum 128-lane groups with pure VPU adds.

    Static, 128-aligned lane slices are vreg selections (no relayout); the
    cross-lane (XLU) reduce is deferred to the finalize step.
    """
    tc = v.shape[1]
    acc = v[:, :128]
    for g in range(1, tc // 128):
        acc = acc + v[:, g * 128:(g + 1) * 128]
    return acc


def _arcface_kernel(logits_ref, labels_ref, loss_ref, sum_acc, xt_acc,
                    *, s, cos_m, sin_m, stab, num_classes, mask_cols):
    """One (batch_tile, class_tile) grid step; class axis is the reduction."""
    c = pl.program_id(1)
    tc = logits_ref.shape[1]

    @pl.when(c == 0)
    def _init():
        sum_acc[...] = jnp.zeros_like(sum_acc)
        xt_acc[...] = jnp.zeros_like(xt_acc)

    x = logits_ref[...].astype(jnp.float32)                  # (TB, TC)
    labels = labels_ref[...]                                 # (TB, 1) int32

    # Tile-local column ids; compare against the tile-local label offset (a
    # per-row scalar) instead of adding c*tc to every iota element.
    col = jax.lax.broadcasted_iota(jnp.int32, x.shape, 1)
    is_tgt = col == (labels - c * tc)                        # (TB, TC) bool

    # Softmax terms, stabilized by the static bound `stab` (valid because
    # |logits| <= 1 for cosine inputs), so the class-tile accumulation is a
    # plain running sum — no per-row max, no flash-style rescale.
    e = jnp.exp(jnp.float32(s) * x - jnp.float32(stab))

    if mask_cols:
        # Ragged class edge: the last class tile reads past column C-1; those
        # lanes hold garbage — zero their softmax contribution exactly.
        e = jnp.where(col < (num_classes - c * tc), e, 0.0)

    # Off-target terms.  Keep the is_tgt mask here (rather than subtracting
    # exp(s*xt - stab) at finalize): the subtraction cancels catastrophically
    # (possible NaN) when the target term dominates the row sum.
    off_e = jnp.where(is_tgt, 0.0, e)
    # Gather the raw (un-clipped) target-class cosine via a masked sum —
    # exactly one column matches per valid row across all class tiles.
    tgt_x = jnp.where(is_tgt, x, 0.0)

    # Lane-dense accumulation into (TB, 128) scratch (full-vreg stores).
    sum_acc[...] += _lane_fold(off_e)
    xt_acc[...] += _lane_fold(tgt_x)

    @pl.when(c == pl.num_programs(1) - 1)
    def _finalize():
        off_sum = jnp.sum(sum_acc[...], axis=-1, keepdims=True)   # (TB, 1)
        xt = jnp.sum(xt_acc[...], axis=-1, keepdims=True)         # (TB, 1)
        eps = 1e-7
        xc = jnp.clip(xt, -1.0 + eps, 1.0 - eps)
        # cos(acos(xc) + m) == xc*cos(m) - sqrt(1 - xc^2)*sin(m)
        tgt_cos = (xc * jnp.float32(cos_m)
                   - jnp.sqrt(jnp.maximum(1.0 - xc * xc, 0.0)) * jnp.float32(sin_m))
        # Keep the original module's form: s * (cos(theta+m) - x) at the
        # label position (NOT the "standard" ArcFace replacement).
        tgt_logit = jnp.float32(s) * (tgt_cos - xt)
        total = off_sum + jnp.exp(tgt_logit - jnp.float32(stab))
        lse = jnp.float32(stab) + jnp.log(total)
        loss_ref[...] = (lse - tgt_logit).astype(loss_ref.dtype)


def arcface_loss(logits, labels, s=30.0, m=0.5, *, tb=None, tc=None):
    """ArcFaceLoss.forward.

    logits: (B, C) cosine similarities in [-1, 1] (f32 or bf16; bf16 is read
            as-is from HBM and upcast per tile inside the kernel).
    labels: (B,) integer class ids in [0, C).
            (Out-of-range labels silently gather xt = 0; PyTorch would error.)
    Returns the scalar mean cross-entropy loss.
    """
    B, C = logits.shape
    labels2d = labels.astype(jnp.int32).reshape(B, 1)

    # bf16 packs (16, 128) per vreg -> keep batch tiles at multiples of 16.
    row_align = 16 if logits.dtype == jnp.bfloat16 else 8

    if tb is None:
        # >= 2 batch tiles whenever B allows, so both v7x TensorCores get
        # work ("parallel" batch axis); cap tiles at 256 rows.
        n_bt = max(2, _cdiv(B, 256))
        tb = max(row_align, _round_up(_cdiv(B, n_bt), row_align))
    if tc is None:
        tc = min(8192, _round_up(C, 128))
        # Keep the logits block <= 8 MiB (16 MiB double-buffered) so the
        # pipeline fits comfortably under the 48 MiB VMEM budget on all of
        # v5e / v6e / v7x.
        cap = max(128, ((8 * 1024 * 1024) // (tb * logits.dtype.itemsize))
                  // 128 * 128)
        tc = min(tc, cap)
    assert tb % row_align == 0 and tc % 128 == 0

    mask_cols = (C % tc) != 0

    # Static log-sum-exp stabilizer: upper bound on every margin-adjusted
    # logit, valid for cosine inputs |x| <= 1 (off-target: s*x <= s; target:
    # s*(cos(t+m)-cos t) <= 2*s*sin(m/2)^2).
    stab = float(s) * max(1.0, 2.0 * math.sin(m / 2.0) ** 2)

    kernel = functools.partial(
        _arcface_kernel, s=float(s), cos_m=math.cos(m), sin_m=math.sin(m),
        stab=stab, num_classes=C, mask_cols=mask_cols)

    per_row = pl.pallas_call(
        kernel,
        out_shape=jax.ShapeDtypeStruct((B, 1), jnp.float32),
        grid=(_cdiv(B, tb), _cdiv(C, tc)),
        in_specs=[
            pl.BlockSpec((tb, tc), lambda b, c: (b, c)),
            pl.BlockSpec((tb, 1), lambda b, c: (b, 0)),
        ],
        out_specs=pl.BlockSpec((tb, 1), lambda b, c: (b, 0)),
        scratch_shapes=[
            pltpu.VMEM((tb, 128), jnp.float32),   # off-target exp-sum partials
            pltpu.VMEM((tb, 128), jnp.float32),   # gathered target cosine
        ],
        compiler_params=pltpu.CompilerParams(
            dimension_semantics=("parallel", "arbitrary"),
            vmem_limit_bytes=48 * 1024 * 1024),
    )(logits, labels2d)

    # Final tiny reduction (mean over the batch) in plain XLA so the batch
    # grid axis stays fully independent / megacore-shardable.
    return jnp.mean(per_row[:, 0])


def _reference(logits, labels, s=30.0, m=0.5):
    """Pure-JAX transcription of the PyTorch module (source of truth)."""
    x = logits.astype(jnp.float32)
    theta = jnp.arccos(jnp.clip(x, -1.0 + 1e-7, 1.0 - 1e-7))
    target_logits = jnp.cos(theta + m)
    one_hot = jax.nn.one_hot(labels, x.shape[-1], dtype=jnp.bool_)
    output = s * jnp.where(one_hot, target_logits - x, x)
    logp = jax.nn.log_softmax(output, axis=-1)
    nll = -jnp.take_along_axis(logp, labels[:, None].astype(jnp.int32),
                               axis=-1)[:, 0]
    return jnp.mean(nll)


if __name__ == "__main__":
    key = jax.random.PRNGKey(0)

    # Small configs covering: exactly tile-aligned; ragged batch rows +
    # ragged class columns (single class tile); and multi-class-tile
    # accumulation with a ragged last class tile (tc forced to 128).
    configs = [
        ((8, 128), None),
        ((20, 600), None),
        ((20, 300), 128),
    ]
    for (B, C), forced_tc in configs:
        k1, k2, key = jax.random.split(key, 3)
        logits = jax.random.uniform(k1, (B, C), jnp.float32,
                                    minval=-1.0, maxval=1.0)
        labels = jax.random.randint(k2, (B,), 0, C, jnp.int32)

        if forced_tc is None:
            loss = arcface_loss(logits, labels)
        else:
            loss = arcface_loss(logits, labels, tc=forced_tc)
        jax.block_until_ready(loss)

        ref = _reference(logits, labels)
        assert jnp.allclose(loss, ref, atol=1e-4, rtol=1e-4), \
            ((B, C), float(loss), float(ref))

    print("KERNEL_OK")
</pallas_src>

<mosaic_0001>
module attributes {stable_mosaic.version = 11 : i64} {
  func.func @_arcface_kernel(%arg0: i32, %arg1: i32, %arg2: memref<8x128xf32, #tpu.memory_space<vmem>>, %arg3: memref<8x1xi32, #tpu.memory_space<vmem>>, %arg4: memref<8x1xf32, #tpu.memory_space<vmem>>, %arg5: memref<8x128xf32, #tpu.memory_space<vmem>>, %arg6: memref<8x128xf32, #tpu.memory_space<vmem>>) attributes {dimension_semantics = [#tpu.dimension_semantics<parallel>, #tpu.dimension_semantics<arbitrary>], iteration_bounds = array<i64: 1, 1>, scalar_prefetch = 0 : i64, scratch_operands = 2 : i64, tpu.core_type = #tpu.core_type<tc>, window_params = [{transform_indices = @transform_0, window_bounds = array<i64: 8, 128>}, {transform_indices = @transform_1, window_bounds = array<i64: 8, 1>}, {transform_indices = @transform_2, window_bounds = array<i64: 8, 1>}]} {
    %c0_i32 = arith.constant 0 : i32
    %0 = arith.cmpi eq, %arg1, %c0_i32 : i32
    %1 = arith.extui %0 : i1 to i32
    %c0_i32_0 = arith.constant 0 : i32
    %2 = arith.cmpi ne, %1, %c0_i32_0 : i32
    scf.if %2 {
      %cst_17 = arith.constant 0.000000e+00 : f32
      %29 = vector.broadcast %cst_17 : f32 to vector<8x128xf32>
      %c0_18 = arith.constant 0 : index
      %c0_19 = arith.constant 0 : index
      %30 = vector.load %arg5[%c0_18, %c0_19] : memref<8x128xf32, #tpu.memory_space<vmem>>, vector<8x128xf32>
      tpu.vector_store %arg5[%c0_18, %c0_19], %29 {strides = array<i32>} : memref<8x128xf32, #tpu.memory_space<vmem>>, vector<8x128xf32>,
      %cst_20 = arith.constant 0.000000e+00 : f32
      %31 = vector.broadcast %cst_20 : f32 to vector<8x128xf32>
      %c0_21 = arith.constant 0 : index
      %c0_22 = arith.constant 0 : index
      %32 = vector.load %arg6[%c0_21, %c0_22] : memref<8x128xf32, #tpu.memory_space<vmem>>, vector<8x128xf32>
      tpu.vector_store %arg6[%c0_21, %c0_22], %31 {strides = array<i32>} : memref<8x128xf32, #tpu.memory_space<vmem>>, vector<8x128xf32>,
    } else {
    }
    %c0 = arith.constant 0 : index
    %c0_1 = arith.constant 0 : index
    %3 = vector.load %arg2[%c0, %c0_1] : memref<8x128xf32, #tpu.memory_space<vmem>>, vector<8x128xf32>
    %c0_2 = arith.constant 0 : index
    %c0_3 = arith.constant 0 : index
    %4 = vector.load %arg3[%c0_2, %c0_3] : memref<8x1xi32, #tpu.memory_space<vmem>>, vector<8x1xi32>
    %5 = tpu.iota {dimensions = array<i32: 1>} : vector<8x128xi32>
    %c128_i32 = arith.constant 128 : i32
    %6 = arith.muli %arg1, %c128_i32 : i32
    %7 = vector.broadcast %6 : i32 to vector<8x1xi32>
    %8 = arith.subi %4, %7 : vector<8x1xi32>
    %9 = vector.broadcast %8 : vector<8x1xi32> to vector<8x128xi32>
    %10 = arith.cmpi eq, %5, %9 : vector<8x128xi32>
    %cst = arith.constant 3.000000e+01 : f32
    %11 = vector.broadcast %cst : f32 to vector<8x128xf32>
    %12 = arith.mulf %11, %3 : vector<8x128xf32>
    %cst_4 = arith.constant 3.000000e+01 : f32
    %13 = vector.broadcast %cst_4 : f32 to vector<8x128xf32>
    %14 = arith.subf %12, %13 : vector<8x128xf32>
    %15 = math.exp %14 : vector<8x128xf32>
    %cst_5 = arith.constant 0.000000e+00 : f32
    %16 = vector.broadcast %cst_5 : f32 to vector<8x128xf32>
    %17 = arith.select %10, %16, %15 : vector<8x128xi1>, vector<8x128xf32>
    %cst_6 = arith.constant 0.000000e+00 : f32
    %18 = vector.broadcast %cst_6 : f32 to vector<8x128xf32>
    %19 = arith.select %10, %3, %18 : vector<8x128xi1>, vector<8x128xf32>
    %c0_7 = arith.constant 0 : index
    %c0_8 = arith.constant 0 : index
    %20 = vector.load %arg5[%c0_7, %c0_8] : memref<8x128xf32, #tpu.memory_space<vmem>>, vector<8x128xf32>
    %21 = arith.addf %20, %17 : vector<8x128xf32>
    %c0_9 = arith.constant 0 : index
    %c0_10 = arith.constant 0 : index
    %22 = vector.load %arg5[%c0_9, %c0_10] : memref<8x128xf32, #tpu.memory_space<vmem>>, vector<8x128xf32>
    tpu.vector_store %arg5[%c0_9, %c0_10], %21 {strides = array<i32>} : memref<8x128xf32, #tpu.memory_space<vmem>>, vector<8x128xf32>,
    %c0_11 = arith.constant 0 : index
    %c0_12 = arith.constant 0 : index
    %23 = vector.load %arg6[%c0_11, %c0_12] : memref<8x128xf32, #tpu.memory_space<vmem>>, vector<8x128xf32>
    %24 = arith.addf %23, %19 : vector<8x128xf32>
    %c0_13 = arith.constant 0 : index
    %c0_14 = arith.constant 0 : index
    %25 = vector.load %arg6[%c0_13, %c0_14] : memref<8x128xf32, #tpu.memory_space<vmem>>, vector<8x128xf32>
    tpu.vector_store %arg6[%c0_13, %c0_14], %24 {strides = array<i32>} : memref<8x128xf32, #tpu.memory_space<vmem>>, vector<8x128xf32>,
    %c0_i32_15 = arith.constant 0 : i32
    %26 = arith.cmpi eq, %arg1, %c0_i32_15 : i32
    %27 = arith.extui %26 : i1 to i32
    %c0_i32_16 = arith.constant 0 : i32
    %28 = arith.cmpi ne, %27, %c0_i32_16 : i32
    scf.if %28 {
      %c0_17 = arith.constant 0 : index
      %c0_18 = arith.constant 0 : index
      %29 = vector.load %arg5[%c0_17, %c0_18] : memref<8x128xf32, #tpu.memory_space<vmem>>, vector<8x128xf32>
      %cst_19 = arith.constant dense<0.000000e+00> : vector<8xf32>
      %30 = vector.multi_reduction <add>, %29, %cst_19 [1] : vector<8x128xf32> to vector<8xf32>
      %31 = vector.shape_cast %30 : vector<8xf32> to vector<8x1xf32>
      %c0_20 = arith.constant 0 : index
      %c0_21 = arith.constant 0 : index
      %32 = vector.load %arg6[%c0_20, %c0_21] : memref<8x128xf32, #tpu.memory_space<vmem>>, vector<8x128xf32>
      %cst_22 = arith.constant dense<0.000000e+00> : vector<8xf32>
      %33 = vector.multi_reduction <add>, %32, %cst_22 [1] : vector<8x128xf32> to vector<8xf32>
      %34 = vector.shape_cast %33 : vector<8xf32> to vector<8x1xf32>
      %cst_23 = arith.constant -0.99999988 : f32
      %cst_24 = arith.constant 0.99999988 : f32
      %35 = vector.broadcast %cst_23 : f32 to vector<8x1xf32>
      %36 = arith.maximumf %35, %34 : vector<8x1xf32>
      %37 = vector.broadcast %cst_24 : f32 to vector<8x1xf32>
      %38 = arith.minimumf %37, %36 : vector<8x1xf32>
      %cst_25 = arith.constant 0.87758255 : f32
      %39 = vector.broadcast %cst_25 : f32 to vector<8x1xf32>
      %40 = arith.mulf %38, %39 : vector<8x1xf32>
      %41 = arith.mulf %38, %38 : vector<8x1xf32>
      %cst_26 = arith.constant 1.000000e+00 : f32
      %42 = vector.broadcast %cst_26 : f32 to vector<8x1xf32>
      %43 = arith.subf %42, %41 : vector<8x1xf32>
      %cst_27 = arith.constant 0.000000e+00 : f32
      %44 = vector.broadcast %cst_27 : f32 to vector<8x1xf32>
      %45 = arith.maximumf %43, %44 : vector<8x1xf32>
      %46 = math.sqrt %45 : vector<8x1xf32>
      %cst_28 = arith.constant 0.47942555 : f32
      %47 = vector.broadcast %cst_28 : f32 to vector<8x1xf32>
      %48 = arith.mulf %46, %47 : vector<8x1xf32>
      %49 = arith.subf %40, %48 : vector<8x1xf32>
      %50 = arith.subf %49, %34 : vector<8x1xf32>
      %cst_29 = arith.constant 3.000000e+01 : f32
      %51 = vector.broadcast %cst_29 : f32 to vector<8x1xf32>
      %52 = arith.mulf %51, %50 : vector<8x1xf32>
      %cst_30 = arith.constant 3.000000e+01 : f32
      %53 = vector.broadcast %cst_30 : f32 to vector<8x1xf32>
      %54 = arith.subf %52, %53 : vector<8x1xf32>
      %55 = math.exp %54 : vector<8x1xf32>
      %56 = arith.addf %31, %55 : vector<8x1xf32>
      %57 = math.log %56 : vector<8x1xf32>
      %cst_31 = arith.constant 3.000000e+01 : f32
      %58 = vector.broadcast %cst_31 : f32 to vector<8x1xf32>
      %59 = arith.addf %58, %57 : vector<8x1xf32>
      %60 = arith.subf %59, %52 : vector<8x1xf32>
      %c0_32 = arith.constant 0 : index
      %c0_33 = arith.constant 0 : index
      %61 = vector.load %arg4[%c0_32, %c0_33] : memref<8x1xf32, #tpu.memory_space<vmem>>, vector<8x1xf32>
      tpu.vector_store %arg4[%c0_32, %c0_33], %60 {strides = array<i32>} : memref<8x1xf32, #tpu.memory_space<vmem>>, vector<8x1xf32>,
    } else {
    }
    return
  }
  func.func @transform_0(%arg0: i32, %arg1: i32) -> (i32, i32) {
    %c0_i32 = arith.constant 0 : i32
    return %arg0, %arg1 : i32, i32
  }
  func.func @transform_1(%arg0: i32, %arg1: i32) -> (i32, i32) {
    %c0_i32 = arith.constant 0 : i32
    %c0_i32_0 = arith.constant 0 : i32
    return %arg0, %c0_i32 : i32, i32
  }
  func.func @transform_2(%arg0: i32, %arg1: i32) -> (i32, i32) {
    %c0_i32 = arith.constant 0 : i32
    %c0_i32_0 = arith.constant 0 : i32
    return %arg0, %c0_i32 : i32, i32
  }
}

</mosaic_0001>

<llo_original>
// kernel: tpu_custom_call.1
$region0: #{tpu_custom_call.1}
  #allocation0 [shape = 'u32[]', space=smem, size = 0x4, offset = 0x4, fixed_abs, tag = 'smem constant byte address 0x4 - core index']
  #allocation1 [shape = 'u32[144,128]{1,0:T(1,128)}', space=vmem, size = 0x12000, scoped, tag = 'internal scratch']
  #allocation2 [shape = 'f32[8,128]{1,0:T(8,128)}', space=vmem, size = 0x1000, scoped, tag = 'scratch operand']
  #allocation3 [shape = 'f32[8,128]{1,0:T(8,128)}', space=vmem, size = 0x1000, scoped, tag = 'scratch operand']
  %s0 = inlined_call_operand.vmem [shape: f32[8,128], index: 0, kind: input, shape index: {}]
  %s1 = inlined_call_operand.vmem [shape: s32[8,1], index: 1, kind: input, shape index: {}]
  %s2 = inlined_call_operand.vmem [shape: f32[8,1], index: 2, kind: output, shape index: {}]
  %s3 = sld [smem:[#allocation0]]
  $region26: #{tpu_custom_call.1} parent=0
    _
  %s5 = ssub.s32 1, %s3
  %s6 = scalar_select 0, %s5, %s3
  // Predicated region
  $region2: #{tpu_custom_call.1} parent=0 // pred_check
    _
  $region3: #{tpu_custom_call.1} parent=0 // pred_check_branch
    %8 = sbr.rel (0) target = $region5
  $region4: #{tpu_custom_call.1} parent=0 // pred_region
    _
  $region5: #{tpu_custom_call.1} parent=0 // pred_fallthru
    _
  // Predicated region
  $region6: #{tpu_custom_call.1} parent=0 // pred_check
    _
  $region7: #{tpu_custom_call.1} parent=0 // pred_check_branch
    %10 = sbr.rel (0) target = $region9
  $region8: #{tpu_custom_call.1} parent=0 // pred_region
    _
  $region9: #{tpu_custom_call.1} parent=0 // pred_fallthru
    _
  %p11 = scmp.eq.s32.totalorder 0, 0
  // Predicated region
  $region10: #{tpu_custom_call.1} parent=0 // pred_check
    %p12 = pneg %p11
  $region11: #{tpu_custom_call.1} parent=0 // pred_check_branch
    %14 = sbr.rel (%p12) target = $region13
  $region12: #{tpu_custom_call.1} parent=0 // pred_region
    %15 = vst [vmem:[#allocation2] sm:$0xff] 0.0
    %16 = vst [vmem:[#allocation3] sm:$0xff] 0.0
  $region13: #{tpu_custom_call.1} parent=0 // pred_fallthru
    _
  %v17 = vld [vmem:[%s0] sm:$0xff]
  %v18 = vld [vmem:[%s1] sm:$0xff]
  %v19 = vlaneseq
  %v20 = vand.u32 %v19, 127
  %s21 = smul.u32 0, 128
  %v22 = vstv %s21
  %v23 = vsub.s32 %v18, %v22
  %24 = vset.pattern.permute.xlu0 0
  %25 = vperm.xlu0 %24, %v23
  %v26 = vpop.permute.xlu0 %25
  %vm27 = vcmp.eq.s32.totalorder %v20, %v26
  %v28 = vmul.f32 %v17, 30.0
  %v29 = vsub.f32 %v28, 30.0
  %v30 = vmul.f32 %v29, 1.442695
  %v31 = vpow.pop %v30
  %v32 = vsel %vm27, 0.0, %v31
  %v33 = vsel %vm27, %v17, 0.0
  %v34 = vld [vmem:[#allocation2] sm:$0xff]
  %v35 = vadd.f32 %v34, %v32
  %36 = vst [vmem:[#allocation2] sm:$0xff] %v35
  %v37 = vld [vmem:[#allocation3] sm:$0xff]
  %v38 = vadd.f32 %v37, %v33
  %39 = vst [vmem:[#allocation3] sm:$0xff] %v38
  // Predicated region
  $region14: #{tpu_custom_call.1} parent=0 // pred_check
    %p40 = pneg %p11
  $region15: #{tpu_custom_call.1} parent=0 // pred_check_branch
    %42 = sbr.rel (%p40) target = $region17
  $region16: #{tpu_custom_call.1} parent=0 // pred_region
    %v43 = vld [vmem:[#allocation2] sm:$0xff]
    %44 = vadd.xlane.f32.xlu0 %v43
    %v45 = vpop.xlane.xlu0 %44
    %v46 = vld [vmem:[#allocation3] sm:$0xff]
    %47 = vadd.xlane.f32.xlu0 %v46
    %v48 = vpop.xlane.xlu0 %47
    %v49 = vmax.f32 %v48, -0.9999999
    %v50 = vmin.f32 %v49, 0.9999999
    %v51 = vmul.f32 %v50, 0.87758255
    %v52 = vmul.f32 %v50, %v50
    %v53 = vsub.f32 1.0, %v52
    %v54 = vmax.f32 %v53, 0.0
    %v55 = vrsqrt.pop %v54
    %v56 = vmul.f32 %v54, %v55
    %vm57 = vcmp.eq.f32.partialorder %v54, inf
    %v58 = vsel %vm57, %v54, %v56
    %vm59 = vcmp.eq.f32.partialorder %v54, 0.0
    %v60 = vand.u32 %v54, 2147483648
    %v61 = vsel %vm59, %v60, %v58
    %v62 = vmul.f32 %v61, 0.47942555
    %v63 = vsub.f32 %v51, %v62
    %v64 = vsub.f32 %v63, %v48
    %v65 = vmul.f32 %v64, 30.0
    %v66 = vsub.f32 %v65, 30.0
    %v67 = vmul.f32 %v66, 1.442695
    %v68 = vpow.pop %v67
    %v69 = vadd.f32 %v45, %v68
    %v70 = vlog2.pop %v69
    %v71 = vmul.f32 %v70, 0.6931472
    %v72 = vadd.f32 %v71, 30.0
    %v73 = vsub.f32 %v72, %v65
    %vm74 = vcmask 7168
    %75 = vst.msk [vmem:[%s2] sm:$0xff] %vm74, %v73
  $region17: #{tpu_custom_call.1} parent=0 // pred_fallthru
    _
  // Predicated region
  $region18: #{tpu_custom_call.1} parent=0 // pred_check
    _
  $region19: #{tpu_custom_call.1} parent=0 // pred_check_branch
    %77 = sbr.rel (0) target = $region21
  $region20: #{tpu_custom_call.1} parent=0 // pred_region
    _
  $region21: #{tpu_custom_call.1} parent=0 // pred_fallthru
    _
  // Predicated region
  $region22: #{tpu_custom_call.1} parent=0 // pred_check
    _
  $region23: #{tpu_custom_call.1} parent=0 // pred_check_branch
    %79 = sbr.rel (0) target = $region25
  $region24: #{tpu_custom_call.1} parent=0 // pred_region
    _
  $region25: #{tpu_custom_call.1} parent=0 // pred_fallthru
    _

</llo_original>
